<compile_context>
chip_gen: v6e
topology: v6e:2x2x1
jax: 0.10.0
libtpu: 0.0.40
codegen_flags: <defaults>
</compile_context>

<pallas_src>
import functools

import jax
import jax.numpy as jnp
from jax.experimental import pallas as pl
from jax.experimental.pallas import tpu as pltpu

_LANES = 128


def _channel_attention_kernel(x_ref, w1_ref, w2_ref, o_ref, sum_acc, max_acc,
                              *, hw, thw, n_s):
    # x_ref block: (1, C, thw); w1: (Ch, C); w2: (C, Ch); o: (1, C, 1)
    # sum_acc / max_acc: (C, 128) f32 running per-channel, per-lane statistics.
    s = pl.program_id(1)
    c = sum_acc.shape[0]
    nchunks = thw // _LANES
    tail = hw - (n_s - 1) * thw          # valid lanes in the last spatial tile
    wide = c <= 128                      # keep accumulators register-resident

    @pl.when(s == 0)
    def _init():
        sum_acc[...] = jnp.zeros_like(sum_acc)
        max_acc[...] = jnp.full_like(max_acc, -jnp.inf)

    def accumulate_wide(valid):
        # Per-128-lane-chunk VPU adds/maxes into the (C, 128) accumulators.
        s_acc = sum_acc[...]
        m_acc = max_acc[...]
        for j in range(nchunks):
            rem = valid - j * _LANES                   # static Python int
            if rem <= 0:
                continue                               # fully past HW: skip
            blk = x_ref[0, :, pl.ds(j * _LANES, _LANES)].astype(jnp.float32)
            if rem < _LANES:                           # the one straddling chunk
                lane = jax.lax.broadcasted_iota(jnp.int32, blk.shape, 1)
                keep = lane < rem
                s_acc = s_acc + jnp.where(keep, blk, 0.0)
                m_acc = jnp.maximum(m_acc, jnp.where(keep, blk, -jnp.inf))
            else:
                s_acc = s_acc + blk
                m_acc = jnp.maximum(m_acc, blk)
        sum_acc[...] = s_acc
        max_acc[...] = m_acc

    def accumulate_narrow(valid):
        # Large-C fallback: per-tile lane reduce into lane 0 of the scratch.
        x = x_ref[0].astype(jnp.float32)               # (C, thw)
        if valid < thw:
            lane = jax.lax.broadcasted_iota(jnp.int32, x.shape, 1)
            keep = lane < valid
            x_sum = jnp.where(keep, x, 0.0)
            x_max = jnp.where(keep, x, -jnp.inf)
        else:
            x_sum = x
            x_max = x
        sum_acc[:, 0:1] = sum_acc[:, 0:1] + jnp.sum(x_sum, axis=-1, keepdims=True)
        max_acc[:, 0:1] = jnp.maximum(max_acc[:, 0:1],
                                      jnp.max(x_max, axis=-1, keepdims=True))

    accumulate = accumulate_wide if wide else accumulate_narrow

    if tail == thw:                       # HW divides evenly: never mask
        accumulate(thw)
    elif n_s == 1:                        # single (partial) tile
        accumulate(tail)
    else:                                 # gate masking to the last tile only
        @pl.when(s < n_s - 1)
        def _steady():
            accumulate(thw)

        @pl.when(s == n_s - 1)
        def _last():
            accumulate(tail)

    @pl.when(s == n_s - 1)
    def _finalize():
        avg = jnp.sum(sum_acc[...], axis=-1, keepdims=True) * (1.0 / hw)   # (C,1)
        mx = jnp.max(max_acc[...], axis=-1, keepdims=True)                 # (C,1)
        # Stack avg / max as two columns -> one fused MLP pass on the MXU.
        col2 = jax.lax.broadcasted_iota(jnp.int32, (c, 2), 1)
        pooled = jnp.where(col2 == 0, avg, mx)                             # (C,2)
        h = jnp.dot(w1_ref[...], pooled,
                    preferred_element_type=jnp.float32)                    # (Ch,2)
        h = jnp.maximum(h, 0.0)                                            # ReLU
        y = jnp.dot(w2_ref[...], h,
                    preferred_element_type=jnp.float32)                    # (C,2)
        gate = jax.nn.sigmoid(y[:, 0:1] + y[:, 1:2])                       # (C,1)
        o_ref[0] = gate.astype(o_ref.dtype)


def _vmem_capacity_bytes():
    try:
        info = pltpu.get_tpu_info()
        cap = getattr(info, "vmem_capacity_bytes", None)
        if cap:
            return int(cap)
    except Exception:
        pass
    return 64 << 20                      # conservative: v7x per-TensorCore VMEM


def _pick_spatial_tile(hw, c, itemsize, vmem_cap):
    """Largest lane-dense spatial tile whose double-buffered copy leaves
    headroom in scoped VMEM on the current TPU generation."""
    per_buffer = min(12 << 20, vmem_cap // 5)          # ~12 MiB on v6e/v7x
    max_thw = max(_LANES, (per_buffer // (c * itemsize)) // _LANES * _LANES)
    max_thw = min(max_thw, 512 * _LANES)               # bound kernel unroll
    hw_up = pl.cdiv(hw, _LANES) * _LANES               # lane-dense; mask the tail
    return min(hw_up, max_thw)


def channel_attention(x_nchw, w1, w2, *, tile_lanes=None):
    """ChannelAttention forward.

    x_nchw: (B, C, H, W) float32/bf16 (PyTorch NCHW convention)
    w1:     (C // ratio, C)  -- fc1 1x1-conv weight, squeezed
    w2:     (C, C // ratio)  -- fc2 1x1-conv weight, squeezed
    returns (B, C, 1, 1) sigmoid channel gates (same dtype as x).
    """
    B, C, H, W = x_nchw.shape
    Ch = w1.shape[0]
    HW = H * W

    # Free reshape (no transpose): channels -> sublanes, spatial -> lanes.
    x = x_nchw.reshape(B, C, HW)

    itemsize = jnp.dtype(x_nchw.dtype).itemsize
    vmem_cap = _vmem_capacity_bytes()
    if tile_lanes is None:
        thw = _pick_spatial_tile(HW, C, itemsize, vmem_cap)
    else:
        assert tile_lanes % _LANES == 0
        thw = tile_lanes
    n_s = pl.cdiv(HW, thw)

    # Double-buffered x tile + weights + accumulators + compiler headroom,
    # capped generation-aware (v7x has only 64 MiB physical VMEM per core).
    tile_bytes = C * thw * itemsize
    needed = (2 * tile_bytes + 2 * C * _LANES * 4
              + 4 * (w1.size + w2.size) + (4 << 20))
    vmem_limit = int(min(max(needed, 16 << 20),
                         max(vmem_cap - (8 << 20), 16 << 20)))

    kernel = functools.partial(_channel_attention_kernel,
                               hw=HW, thw=thw, n_s=n_s)

    out = pl.pallas_call(
        kernel,
        out_shape=jax.ShapeDtypeStruct((B, C, 1), x_nchw.dtype),
        grid_spec=pltpu.PrefetchScalarGridSpec(
            num_scalar_prefetch=0,
            grid=(B, n_s),                              # batch outer, spatial inner
            in_specs=[
                pl.BlockSpec((1, C, thw), lambda b, s: (b, 0, s)),
                pl.BlockSpec((Ch, C), lambda b, s: (0, 0)),   # resident weights
                pl.BlockSpec((C, Ch), lambda b, s: (0, 0)),
            ],
            out_specs=pl.BlockSpec((1, C, 1), lambda b, s: (b, 0, 0)),
            scratch_shapes=[
                pltpu.VMEM((C, _LANES), jnp.float32),   # per-lane running sum
                pltpu.VMEM((C, _LANES), jnp.float32),   # per-lane running max
            ],
        ),
        compiler_params=pltpu.CompilerParams(
            dimension_semantics=("parallel", "arbitrary"),
            vmem_limit_bytes=vmem_limit),
        cost_estimate=pl.CostEstimate(
            flops=2 * B * C * HW + 8 * B * C * Ch,
            transcendentals=B * C,
            bytes_accessed=B * C * HW * itemsize),
    )(x, w1, w2)

    return out.reshape(B, C, 1, 1)


def _reference(x_nchw, w1, w2):
    # Pure-JAX reference mirroring the PyTorch forward (f32, exact matmuls).
    xf = x_nchw.astype(jnp.float32)
    avg = jnp.mean(xf, axis=(2, 3))                     # (B, C)
    mx = jnp.max(xf, axis=(2, 3))                       # (B, C)
    hi = jax.lax.Precision.HIGHEST

    def mlp(v):
        h = jnp.maximum(jnp.dot(v, w1.T, precision=hi), 0.0)
        return jnp.dot(h, w2.T, precision=hi)

    out = jax.nn.sigmoid(mlp(avg) + mlp(mx))
    B, C = out.shape
    return out.reshape(B, C, 1, 1)


if __name__ == "__main__":
    def run_case(B, C, H, W, ratio, dtype, tile_lanes=None, tol=1e-4):
        Ch = max(C // ratio, 1)
        key = jax.random.PRNGKey(0)
        kx, k1, k2 = jax.random.split(key, 3)
        x = jax.random.normal(kx, (B, C, H, W), dtype=jnp.float32).astype(dtype)
        # Deterministic synthetic 1x1-conv weights (no bias), Conv2d-like scale.
        w1 = jax.random.normal(k1, (Ch, C), dtype=jnp.float32) * (1.0 / jnp.sqrt(C))
        w2 = jax.random.normal(k2, (C, Ch), dtype=jnp.float32) * (1.0 / jnp.sqrt(Ch))

        out = jax.block_until_ready(
            channel_attention(x, w1, w2, tile_lanes=tile_lanes))
        ref = _reference(x, w1, w2)
        assert out.shape == (B, C, 1, 1), out.shape
        err = float(jnp.max(jnp.abs(out.astype(jnp.float32) - ref)))
        assert err <= tol, (B, C, H, W, str(dtype), err)

    # Main case: small shapes consistent with the module (ratio=16).
    run_case(2, 64, 16, 16, 16, jnp.float32)
    # Multi-tile spatial stream with a masked partial last tile (HW % thw != 0).
    run_case(1, 64, 10, 20, 16, jnp.float32, tile_lanes=128)
    # Large-C fallback accumulator path + single partial (HW < 128) tile.
    run_case(2, 256, 8, 8, 16, jnp.float32)
    # bf16 activations (f32 accumulation in-kernel).
    run_case(2, 64, 16, 16, 16, jnp.bfloat16, tol=1e-2)

    print("KERNEL_OK")
</pallas_src>

<mosaic_0001>
module attributes {stable_mosaic.version = 11 : i64} {
  func.func @_channel_attention_kernel(%arg0: i32, %arg1: i32, %arg2: memref<1x64x256xf32, #tpu.memory_space<vmem>>, %arg3: memref<4x64xf32, #tpu.memory_space<vmem>>, %arg4: memref<64x4xf32, #tpu.memory_space<vmem>>, %arg5: memref<1x64x1xf32, #tpu.memory_space<vmem>>, %arg6: memref<64x128xf32, #tpu.memory_space<vmem>>, %arg7: memref<64x128xf32, #tpu.memory_space<vmem>>) attributes {dimension_semantics = [#tpu.dimension_semantics<parallel>, #tpu.dimension_semantics<arbitrary>], iteration_bounds = array<i64: 2, 1>, scalar_prefetch = 0 : i64, scratch_operands = 2 : i64, tpu.core_type = #tpu.core_type<tc>, window_params = [{transform_indices = @transform_0, window_bounds = array<i64: 1, 64, 256>}, {pipeline_mode = #tpu.pipeline_mode<synchronous>, transform_indices = @transform_1, window_bounds = array<i64: 4, 64>}, {pipeline_mode = #tpu.pipeline_mode<synchronous>, transform_indices = @transform_2, window_bounds = array<i64: 64, 4>}, {transform_indices = @transform_3, window_bounds = array<i64: 1, 64, 1>}]} {
    %c0_i32 = arith.constant 0 : i32
    %0 = arith.cmpi eq, %arg1, %c0_i32 : i32
    %1 = arith.extui %0 : i1 to i32
    %c0_i32_0 = arith.constant 0 : i32
    %2 = arith.cmpi ne, %1, %c0_i32_0 : i32
    scf.if %2 {
      %cst = arith.constant 0.000000e+00 : f32
      %18 = vector.broadcast %cst : f32 to vector<64x128xf32>
      %c0_15 = arith.constant 0 : index
      %c0_16 = arith.constant 0 : index
      %19 = vector.load %arg6[%c0_15, %c0_16] : memref<64x128xf32, #tpu.memory_space<vmem>>, vector<64x128xf32>
      tpu.vector_store %arg6[%c0_15, %c0_16], %18 {strides = array<i32>} : memref<64x128xf32, #tpu.memory_space<vmem>>, vector<64x128xf32>,
      %cst_17 = arith.constant 0xFF800000 : f32
      %20 = vector.broadcast %cst_17 : f32 to vector<64x128xf32>
      %c0_18 = arith.constant 0 : index
      %c0_19 = arith.constant 0 : index
      %21 = vector.load %arg7[%c0_18, %c0_19] : memref<64x128xf32, #tpu.memory_space<vmem>>, vector<64x128xf32>
      tpu.vector_store %arg7[%c0_18, %c0_19], %20 {strides = array<i32>} : memref<64x128xf32, #tpu.memory_space<vmem>>, vector<64x128xf32>,
    } else {
    }
    %c0 = arith.constant 0 : index
    %c0_1 = arith.constant 0 : index
    %3 = vector.load %arg6[%c0, %c0_1] : memref<64x128xf32, #tpu.memory_space<vmem>>, vector<64x128xf32>
    %c0_2 = arith.constant 0 : index
    %c0_3 = arith.constant 0 : index
    %4 = vector.load %arg7[%c0_2, %c0_3] : memref<64x128xf32, #tpu.memory_space<vmem>>, vector<64x128xf32>
    %c0_4 = arith.constant 0 : index
    %c0_5 = arith.constant 0 : index
    %c0_6 = arith.constant 0 : index
    %5 = vector.load %arg2[%c0_4, %c0_5, %c0_6] : memref<1x64x256xf32, #tpu.memory_space<vmem>>, vector<1x64x128xf32>
    %6 = vector.shape_cast %5 : vector<1x64x128xf32> to vector<64x128xf32>
    %7 = arith.addf %3, %6 : vector<64x128xf32>
    %8 = arith.maximumf %4, %6 : vector<64x128xf32>
    %c0_7 = arith.constant 0 : index
    %c0_8 = arith.constant 0 : index
    %c128 = arith.constant 128 : index
    %9 = vector.load %arg2[%c0_7, %c0_8, %c128] : memref<1x64x256xf32, #tpu.memory_space<vmem>>, vector<1x64x128xf32>
    %10 = vector.shape_cast %9 : vector<1x64x128xf32> to vector<64x128xf32>
    %11 = arith.addf %7, %10 : vector<64x128xf32>
    %12 = arith.maximumf %8, %10 : vector<64x128xf32>
    %c0_9 = arith.constant 0 : index
    %c0_10 = arith.constant 0 : index
    %13 = vector.load %arg6[%c0_9, %c0_10] : memref<64x128xf32, #tpu.memory_space<vmem>>, vector<64x128xf32>
    tpu.vector_store %arg6[%c0_9, %c0_10], %11 {strides = array<i32>} : memref<64x128xf32, #tpu.memory_space<vmem>>, vector<64x128xf32>,
    %c0_11 = arith.constant 0 : index
    %c0_12 = arith.constant 0 : index
    %14 = vector.load %arg7[%c0_11, %c0_12] : memref<64x128xf32, #tpu.memory_space<vmem>>, vector<64x128xf32>
    tpu.vector_store %arg7[%c0_11, %c0_12], %12 {strides = array<i32>} : memref<64x128xf32, #tpu.memory_space<vmem>>, vector<64x128xf32>,
    %c0_i32_13 = arith.constant 0 : i32
    %15 = arith.cmpi eq, %arg1, %c0_i32_13 : i32
    %16 = arith.extui %15 : i1 to i32
    %c0_i32_14 = arith.constant 0 : i32
    %17 = arith.cmpi ne, %16, %c0_i32_14 : i32
    scf.if %17 {
      %c0_15 = arith.constant 0 : index
      %c0_16 = arith.constant 0 : index
      %18 = vector.load %arg6[%c0_15, %c0_16] : memref<64x128xf32, #tpu.memory_space<vmem>>, vector<64x128xf32>
      %cst = arith.constant dense<0.000000e+00> : vector<64xf32>
      %19 = vector.multi_reduction <add>, %18, %cst [1] : vector<64x128xf32> to vector<64xf32>
      %20 = vector.shape_cast %19 : vector<64xf32> to vector<64x1xf32>
      %cst_17 = arith.constant 3.906250e-03 : f32
      %21 = vector.broadcast %cst_17 : f32 to vector<64x1xf32>
      %22 = arith.mulf %20, %21 : vector<64x1xf32>
      %c0_18 = arith.constant 0 : index
      %c0_19 = arith.constant 0 : index
      %23 = vector.load %arg7[%c0_18, %c0_19] : memref<64x128xf32, #tpu.memory_space<vmem>>, vector<64x128xf32>
      %cst_20 = arith.constant dense<0xFF800000> : vector<64xf32>
      %24 = vector.multi_reduction <maximumf>, %23, %cst_20 [1] : vector<64x128xf32> to vector<64xf32>
      %25 = vector.shape_cast %24 : vector<64xf32> to vector<64x1xf32>
      %26 = tpu.iota {dimensions = array<i32: 1>} : vector<64x2xi32>
      %c0_i32_21 = arith.constant 0 : i32
      %27 = vector.broadcast %c0_i32_21 : i32 to vector<64x2xi32>
      %28 = arith.cmpi eq, %26, %27 : vector<64x2xi32>
      %29 = vector.shape_cast %22 : vector<64x1xf32> to vector<64x1xf32>
      %30 = vector.broadcast %29 : vector<64x1xf32> to vector<64x2xf32>
      %31 = vector.shape_cast %25 : vector<64x1xf32> to vector<64x1xf32>
      %32 = vector.broadcast %31 : vector<64x1xf32> to vector<64x2xf32>
      %33 = arith.select %28, %30, %32 : vector<64x2xi1>, vector<64x2xf32>
      %c0_22 = arith.constant 0 : index
      %c0_23 = arith.constant 0 : index
      %34 = vector.load %arg3[%c0_22, %c0_23] : memref<4x64xf32, #tpu.memory_space<vmem>>, vector<4x64xf32>
      %cst_24 = arith.constant dense<0.000000e+00> : vector<4x2xf32>
      %35 = tpu.matmul %34, %33, %cst_24 {dimension_numbers = #tpu.dot_dimension_numbers<[1], [0], [0], [1], [0, 0, 1, 1], [], []>} : vector<4x64xf32>, vector<64x2xf32>, vector<4x2xf32> -> vector<4x2xf32>
      %cst_25 = arith.constant 0.000000e+00 : f32
      %36 = vector.broadcast %cst_25 : f32 to vector<4x2xf32>
      %37 = arith.maximumf %35, %36 : vector<4x2xf32>
      %c0_26 = arith.constant 0 : index
      %c0_27 = arith.constant 0 : index
      %38 = vector.load %arg4[%c0_26, %c0_27] : memref<64x4xf32, #tpu.memory_space<vmem>>, vector<64x4xf32>
      %cst_28 = arith.constant dense<0.000000e+00> : vector<64x2xf32>
      %39 = tpu.matmul %38, %37, %cst_28 {dimension_numbers = #tpu.dot_dimension_numbers<[1], [0], [0], [1], [0, 0, 1, 1], [], []>} : vector<64x4xf32>, vector<4x2xf32>, vector<64x2xf32> -> vector<64x2xf32>
      %40 = vector.extract_strided_slice %39 {offsets = [0, 0], sizes = [64, 1], strides = [1, 1]} : vector<64x2xf32> to vector<64x1xf32>
      %41 = vector.extract_strided_slice %39 {offsets = [0, 1], sizes = [64, 1], strides = [1, 1]} : vector<64x2xf32> to vector<64x1xf32>
      %42 = arith.addf %40, %41 : vector<64x1xf32>
      %43 = arith.negf %42 : vector<64x1xf32>
      %44 = math.exp %43 : vector<64x1xf32>
      %cst_29 = arith.constant 1.000000e+00 : f32
      %45 = vector.broadcast %cst_29 : f32 to vector<64x1xf32>
      %46 = arith.addf %45, %44 : vector<64x1xf32>
      %47 = arith.divf %45, %46 : vector<64x1xf32>
      %c0_30 = arith.constant 0 : index
      %c0_31 = arith.constant 0 : index
      %c0_32 = arith.constant 0 : index
      %48 = vector.load %arg5[%c0_30, %c0_31, %c0_32] : memref<1x64x1xf32, #tpu.memory_space<vmem>>, vector<1x64x1xf32>
      %49 = vector.shape_cast %48 : vector<1x64x1xf32> to vector<64x1xf32>
      %50 = vector.shape_cast %47 : vector<64x1xf32> to vector<1x64x1xf32>
      tpu.vector_store %arg5[%c0_30, %c0_31, %c0_32], %50 {strides = array<i32>} : memref<1x64x1xf32, #tpu.memory_space<vmem>>, vector<1x64x1xf32>,
    } else {
    }
    return
  }
  func.func @transform_0(%arg0: i32, %arg1: i32) -> (i32, i32, i32) {
    %c0_i32 = arith.constant 0 : i32
    %c0_i32_0 = arith.constant 0 : i32
    return %arg0, %c0_i32, %arg1 : i32, i32, i32
  }
  func.func @transform_1(%arg0: i32, %arg1: i32) -> (i32, i32) {
    %c0_i32 = arith.constant 0 : i32
    %c0_i32_0 = arith.constant 0 : i32
    %c0_i32_1 = arith.constant 0 : i32
    return %c0_i32, %c0_i32_0 : i32, i32
  }
  func.func @transform_2(%arg0: i32, %arg1: i32) -> (i32, i32) {
    %c0_i32 = arith.constant 0 : i32
    %c0_i32_0 = arith.constant 0 : i32
    %c0_i32_1 = arith.constant 0 : i32
    return %c0_i32, %c0_i32_0 : i32, i32
  }
  func.func @transform_3(%arg0: i32, %arg1: i32) -> (i32, i32, i32) {
    %c0_i32 = arith.constant 0 : i32
    %c0_i32_0 = arith.constant 0 : i32
    %c0_i32_1 = arith.constant 0 : i32
    return %arg0, %c0_i32, %c0_i32_0 : i32, i32, i32
  }
}

</mosaic_0001>

<llo_original>
// kernel: tpu_custom_call.1
$region0: #{tpu_custom_call.1}
  #allocation0 [shape = 'u32[]', space=smem, size = 0x4, offset = 0x4, fixed_abs, tag = 'smem constant byte address 0x4 - core index']
  #allocation1 [shape = 'u32[144,128]{1,0:T(1,128)}', space=vmem, size = 0x12000, scoped, tag = 'internal scratch']
  #allocation2 [shape = 'f32[64,128]{1,0:T(8,128)}', space=vmem, size = 0x8000, scoped, tag = 'scratch operand']
  #allocation3 [shape = 'f32[64,128]{1,0:T(8,128)}', space=vmem, size = 0x8000, scoped, tag = 'scratch operand']
  %s0 = inlined_call_operand.hbm [shape: f32[2,64,256], index: 0, kind: input, shape index: {}]
  %s1 = inlined_call_operand.vmem [shape: f32[4,64], index: 1, kind: input, shape index: {}]
  %s2 = inlined_call_operand.vmem [shape: f32[64,4], index: 2, kind: input, shape index: {}]
  %s3 = inlined_call_operand.vmem [shape: f32[2,64,1], index: 3, kind: output, shape index: {}]
  %s4 = sld [smem:[#allocation0]]
  $region57: #{tpu_custom_call.1} parent=0
    _
  %s6 = ssub.s32 1, %s4
  %s7 = scalar_select 0, %s6, %s4
  $region1: #{tpu_custom_call.1} parent=0
    #allocation4 [shape = 'u8[131072]{0}', space=vmem, size = 0x20000, scoped, tag = 'input window, operand 0']
    #allocation5 [shape = 's32[2]{0}', space=sflag, size = 0x8, scoped, tag = 'scoped memory for tpu_custom_call.1']
    %8 = vsyncpa [#allocation5], 0
    %s9 = scalar_lea.sflag [#allocation5], 1
    %10 = vsyncpa %s9, 0
    loop: start=0, step=1, limit=4
    $region2: #{tpu_custom_call.1} parent=1 // loop_pre_header
      _
    $region3: #{tpu_custom_call.1} parent=1 // loop_header
      %s12 = sphi 0, %s16
      %p13 = scmp.ge.s32.totalorder %s12, 4
      %s19 = sphi 0, %s31
      %s20 = sphi 0, %s27
      %s21 = sphi 0, %s19
      %s22 = sphi 0, %s20
      %s23 = sphi 0, %s21
      %s24 = sphi 0, %s22
      %s36 = sphi 0, %s38
      %s39 = sphi 0, %s36
      %s40 = sphi 0, %s39
      %s56 = sphi 0, %s40
      %s60 = sphi 0, %s60
      %s62 = sphi 0, %s60
      %s63 = sphi 0, %s62
      %s77 = sphi 0, %s63
      %s81 = sphi 0, %s81
      %s83 = sphi 0, %s81
      %s84 = sphi 0, %s83
      %s98 = sphi 0, %s84
      %s104 = sphi 0, %s106
      %s107 = sphi 0, %s104
      %s108 = sphi 0, %s107
      %s124 = sphi 0, %s108
    $region4: #{tpu_custom_call.1} parent=1 // loop_header_branch
      %15 = sbr.rel (%p13) target = $region8
    $region5: #{tpu_custom_call.1} parent=1 // loop_body
      %s17 = ssub.s32 %s12, 1
      %s18 = ssub.s32 %s12, 2
      %s25 = sadd.s32 1, %s20
      %p26 = scmp.ge.s32.totalorder %s25, 1
      %s27 = scalar_select %p26, 0, %s25
      %s28 = sadd.s32 1, %s19
      %s29 = scalar_select %p26, %s28, %s19
      %p30 = scmp.ge.s32.totalorder %s29, 2
      %s31 = scalar_select %p30, 0, %s29
      %s32 = ssub.s32 %s19, %s31
      %s33 = ssub.s32 %s20, %s27
      %s34 = sor.u32 %s32, %s33
      %p35 = scmp.eq.s32.totalorder %s34, 0
      %s37 = sadd.s32 %s36, 1
      %s38 = scalar_select %p35, %s36, %s37
      %p41 = pneg %p35
      %p42 = scmp.eq.s32.totalorder %s12, 1
      %p43 = por %p41, %p42
      %p44 = scmp.ne.s32.totalorder %s36, %s39
      %p45 = scmp.eq.s32.totalorder %s12, 0
      %p46 = por %p44, %p45
      %p47 = scmp.ne.s32.totalorder %s36, %s39
      %p48 = scmp.eq.s32.totalorder %s17, 1
      %p49 = por %p47, %p48
      %p50 = scmp.ne.s32.totalorder %s39, %s40
      %p51 = scmp.eq.s32.totalorder %s17, 0
      %p52 = por %p50, %p51
      %p53 = scmp.ne.s32.totalorder %s39, %s40
      %p54 = scmp.eq.s32.totalorder %s18, 1
      %p55 = por %p53, %p54
      %p57 = scmp.ne.s32.totalorder %s40, %s56
      %p58 = scmp.eq.s32.totalorder %s18, 0
      %p59 = por %p57, %p58
      %s61 = sadd.s32 %s60, 1
      %p64 = scmp.eq.s32.totalorder %s12, 1
      %p65 = scmp.ne.s32.totalorder %s60, %s62
      %p66 = scmp.eq.s32.totalorder %s12, 0
      %p67 = por %p65, %p66
      %p68 = scmp.ne.s32.totalorder %s60, %s62
      %p69 = scmp.eq.s32.totalorder %s17, 1
      %p70 = por %p68, %p69
      %p71 = scmp.ne.s32.totalorder %s62, %s63
      %p72 = scmp.eq.s32.totalorder %s17, 0
      %p73 = por %p71, %p72
      %p74 = scmp.ne.s32.totalorder %s62, %s63
      %p75 = scmp.eq.s32.totalorder %s18, 1
      %p76 = por %p74, %p75
      %p78 = scmp.ne.s32.totalorder %s63, %s77
      %p79 = scmp.eq.s32.totalorder %s18, 0
      %p80 = por %p78, %p79
      %s82 = sadd.s32 %s81, 1
      %p85 = scmp.eq.s32.totalorder %s12, 1
      %p86 = scmp.ne.s32.totalorder %s81, %s83
      %p87 = scmp.eq.s32.totalorder %s12, 0
      %p88 = por %p86, %p87
      %p89 = scmp.ne.s32.totalorder %s81, %s83
      %p90 = scmp.eq.s32.totalorder %s17, 1
      %p91 = por %p89, %p90
      %p92 = scmp.ne.s32.totalorder %s83, %s84
      %p93 = scmp.eq.s32.totalorder %s17, 0
      %p94 = por %p92, %p93
      %p95 = scmp.ne.s32.totalorder %s83, %s84
      %p96 = scmp.eq.s32.totalorder %s18, 1
      %p97 = por %p95, %p96
      %p99 = scmp.ne.s32.totalorder %s84, %s98
      %p100 = scmp.eq.s32.totalorder %s18, 0
      %p101 = por %p99, %p100
      %s102 = ssub.s32 %s19, %s31
      %p103 = scmp.eq.s32.totalorder %s102, 0
      %s105 = sadd.s32 %s104, 1
      %s106 = scalar_select %p103, %s104, %s105
      %p109 = pneg %p103
      %p110 = scmp.eq.s32.totalorder %s12, 1
      %p111 = por %p109, %p110
      %p112 = scmp.ne.s32.totalorder %s104, %s107
      %p113 = scmp.eq.s32.totalorder %s12, 0
      %p114 = por %p112, %p113
      %p115 = scmp.ne.s32.totalorder %s104, %s107
      %p116 = scmp.eq.s32.totalorder %s17, 1
      %p117 = por %p115, %p116
      %p118 = scmp.ne.s32.totalorder %s107, %s108
      %p119 = scmp.eq.s32.totalorder %s17, 0
      %p120 = por %p118, %p119
      %p121 = scmp.ne.s32.totalorder %s107, %s108
      %p122 = scmp.eq.s32.totalorder %s18, 1
      %p123 = por %p121, %p122
      %p125 = scmp.ne.s32.totalorder %s108, %s124
      %p126 = scmp.eq.s32.totalorder %s18, 0
      %p127 = por %p125, %p126
      %p128 = scmp.le.s32.totalorder 1, %s12
      %p129 = scmp.lt.s32.totalorder %s12, 3
      %p130 = pnand %p128, %p129
      %p131 = pneg %p130
      // Predicated region
      $region9: #{tpu_custom_call.1} parent=5 // pred_check
        _
      $region10: #{tpu_custom_call.1} parent=5 // pred_check_branch
        %133 = sbr.rel (%p130) target = $region12
      $region11: #{tpu_custom_call.1} parent=5 // pred_region
        %s134 = ssub.s32 %s12, 1
        // Predicated region
        $region13: #{tpu_custom_call.1} parent=11 // pred_check
          %p135 = pneg %p73
        $region14: #{tpu_custom_call.1} parent=11 // pred_check_branch
          %137 = sbr.rel (%p135) target = $region16
        $region15: #{tpu_custom_call.1} parent=11 // pred_region
          _
        $region16: #{tpu_custom_call.1} parent=11 // pred_fallthru
          _
        // Predicated region
        $region17: #{tpu_custom_call.1} parent=11 // pred_check
          %p138 = pneg %p94
        $region18: #{tpu_custom_call.1} parent=11 // pred_check_branch
          %140 = sbr.rel (%p138) target = $region20
        $region19: #{tpu_custom_call.1} parent=11 // pred_region
          _
        $region20: #{tpu_custom_call.1} parent=11 // pred_fallthru
          _
      $region12: #{tpu_custom_call.1} parent=5 // pred_fallthru
        _
      %p141 = scmp.lt.s32.totalorder %s12, 2
      // Predicated region
      $region21: #{tpu_custom_call.1} parent=5 // pred_check
        %p142 = pneg %p141
      $region22: #{tpu_custom_call.1} parent=5 // pred_check_branch
        %144 = sbr.rel (%p142) target = $region24
      $region23: #{tpu_custom_call.1} parent=5 // pred_region
        // Predicated region
        $region25: #{tpu_custom_call.1} parent=23 // pred_check
          %p145 = pneg %p46
        $region26: #{tpu_custom_call.1} parent=23 // pred_check_branch
          %147 = sbr.rel (%p145) target = $region28
        $region27: #{tpu_custom_call.1} parent=23 // pred_region
          %s148 = sand.u32 %s36, 1
          %s149 = scalar_lea.sflag [#allocation5], %s148
          %s150 = sand.u32 %s36, 1
          %s151 = smul.addr %s150, 128
          %s152 = scalar_lea.vmem [#allocation4], %s151
          %s153 = smul.u32 2, %s20
          %s155 = ssub.s32 2048, 2048
          %156 = vsyncadd %s149, %s155
          %s157 = smul.addr %s19, 16
          %s158 = sadd.s32 %s153, %s157
          %s159 = smul.addr %s158, 128
          %s160 = scalar_lea.hbm %s0, %s159
          %s161 = sshll.u32 %s152, 4
          %s162 = int_to_ptr.vmem [resolvable:$true] %s161
          %167 = dma.hbm_to_vmem [thread:$0]  %s160, 2048, %s162, %s149, 256, 256, 16
        $region28: #{tpu_custom_call.1} parent=23 // pred_fallthru
          _
      $region24: #{tpu_custom_call.1} parent=5 // pred_fallthru
        _
      %p168 = scmp.le.s32.totalorder 1, %s12
      %p169 = scmp.lt.s32.totalorder %s12, 3
      %p170 = pnand %p168, %p169
      %p171 = pneg %p170
      // Predicated region
      $region29: #{tpu_custom_call.1} parent=5 // pred_check
        _
      $region30: #{tpu_custom_call.1} parent=5 // pred_check_branch
        %173 = sbr.rel (%p170) target = $region32
      $region31: #{tpu_custom_call.1} parent=5 // pred_region
        %s174 = ssub.s32 %s12, 1
        %s175 = sand.u32 %s39, 1
        %s176 = scalar_lea.sflag [#allocation5], %s175
        %s177 = sand.u32 %s39, 1
        %s178 = smul.addr %s177, 128
        %s179 = scalar_lea.vmem [#allocation4], %s178
        // Predicated region
        $region33: #{tpu_custom_call.1} parent=31 // pred_check
          %p180 = pneg %p52
        $region34: #{tpu_custom_call.1} parent=31 // pred_check_branch
          %182 = sbr.rel (%p180) target = $region36
        $region35: #{tpu_custom_call.1} parent=31 // pred_region
          %183 = dma.done %s176, 2048
        $region36: #{tpu_custom_call.1} parent=31 // pred_fallthru
          _
        %s184 = sand.u32 %s39, 1
        %s185 = scalar_lea.sflag [#allocation5], %s184
        %s186 = sand.u32 %s39, 1
        %s187 = smul.addr %s186, 128
        %s188 = scalar_lea.vmem [#allocation4], %s187
        %p189 = pneg %p52
        %p190 = pneg %p49
        %p191 = pneg %p73
        %p192 = pneg %p70
        %p193 = pneg %p94
        %p194 = pneg %p91
        %p195 = pneg %p120
        %p196 = pneg %p117
        %p197 = scmp.lt.s32.totalorder %s21, 1
        %s198 = scalar_select %p197, %s21, 1
        %s199 = smul.addr %s198, 8
        %s200 = smul.addr %s199, 8
        %s201 = scalar_lea.vmem %s3, %s200
        %s202 = smul.u32 2, %s22
        %p203 = scmp.lt.s32.totalorder %s21, 1
        %s204 = scalar_select %p203, %s21, 1
        %s205 = smul.addr %s204, 8
        %s206 = smul.addr %s205, 8
        %s207 = scalar_lea.vmem %s3, %s206
        %p208 = scmp.eq.s32.totalorder %s22, 0
        // Predicated region
        $region37: #{tpu_custom_call.1} parent=31 // pred_check
          %p209 = pneg %p208
        $region38: #{tpu_custom_call.1} parent=31 // pred_check_branch
          %211 = sbr.rel (%p209) target = $region40
        $region39: #{tpu_custom_call.1} parent=31 // pred_region
          %212 = vst [vmem:[#allocation2] sm:$0xff] 0.0
          %213 = vst [vmem:[#allocation2 + $0x8] sm:$0xff] 0.0
          %214 = vst [vmem:[#allocation2 + $0x10] sm:$0xff] 0.0
          %215 = vst [vmem:[#allocation2 + $0x18] sm:$0xff] 0.0
          %216 = vst [vmem:[#allocation2 + $0x20] sm:$0xff] 0.0
          %217 = vst [vmem:[#allocation2 + $0x28] sm:$0xff] 0.0
          %218 = vst [vmem:[#allocation2 + $0x30] sm:$0xff] 0.0
          %219 = vst [vmem:[#allocation2 + $0x38] sm:$0xff] 0.0
          %220 = vst [vmem:[#allocation3] sm:$0xff] -inf
          %221 = vst [vmem:[#allocation3 + $0x8] sm:$0xff] -inf
          %222 = vst [vmem:[#allocation3 + $0x10] sm:$0xff] -inf
          %223 = vst [vmem:[#allocation3 + $0x18] sm:$0xff] -inf
          %224 = vst [vmem:[#allocation3 + $0x20] sm:$0xff] -inf
          %225 = vst [vmem:[#allocation3 + $0x28] sm:$0xff] -inf
          %226 = vst [vmem:[#allocation3 + $0x30] sm:$0xff] -inf
          %227 = vst [vmem:[#allocation3 + $0x38] sm:$0xff] -inf
        $region40: #{tpu_custom_call.1} parent=31 // pred_fallthru
          _
        %v228 = vld [vmem:[#allocation2] sm:$0xff]
        %v229 = vld [vmem:[#allocation2 + $0x8] sm:$0xff]
        %v230 = vld [vmem:[#allocation2 + $0x10] sm:$0xff]
        %v231 = vld [vmem:[#allocation2 + $0x18] sm:$0xff]
        %v232 = vld [vmem:[#allocation2 + $0x20] sm:$0xff]
        %v233 = vld [vmem:[#allocation2 + $0x28] sm:$0xff]
        %v234 = vld [vmem:[#allocation2 + $0x30] sm:$0xff]
        %v235 = vld [vmem:[#allocation2 + $0x38] sm:$0xff]
        %v236 = vld [vmem:[#allocation3] sm:$0xff]
        %v237 = vld [vmem:[#allocation3 + $0x8] sm:$0xff]
        %v238 = vld [vmem:[#allocation3 + $0x10] sm:$0xff]
        %v239 = vld [vmem:[#allocation3 + $0x18] sm:$0xff]
        %v240 = vld [vmem:[#allocation3 + $0x20] sm:$0xff]
        %v241 = vld [vmem:[#allocation3 + $0x28] sm:$0xff]
        %v242 = vld [vmem:[#allocation3 + $0x30] sm:$0xff]
        %v243 = vld [vmem:[#allocation3 + $0x38] sm:$0xff]
        %v244 = vld [vmem:[%s179] sm:$0xff]
        %v245 = vld [vmem:[%s179 + $0x10] sm:$0xff]
        %v246 = vld [vmem:[%s179 + $0x20] sm:$0xff]
        %v247 = vld [vmem:[%s179 + $0x30] sm:$0xff]
        %v248 = vld [vmem:[%s179 + $0x40] sm:$0xff]
        %v249 = vld [vmem:[%s179 + $0x50] sm:$0xff]
        %v250 = vld [vmem:[%s179 + $0x60] sm:$0xff]
        %v251 = vld [vmem:[%s179 + $0x70] sm:$0xff]
        %v252 = vadd.f32 %v228, %v244
        %v253 = vadd.f32 %v229, %v245
        %v254 = vadd.f32 %v230, %v246
        %v255 = vadd.f32 %v231, %v247
        %v256 = vadd.f32 %v232, %v248
        %v257 = vadd.f32 %v233, %v249
        %v258 = vadd.f32 %v234, %v250
        %v259 = vadd.f32 %v235, %v251
        %v260 = vmax.f32 %v236, %v244
        %v261 = vmax.f32 %v237, %v245
        %v262 = vmax.f32 %v238, %v246
        %v263 = vmax.f32 %v239, %v247
        %v264 = vmax.f32 %v240, %v248
        %v265 = vmax.f32 %v241, %v249
        %v266 = vmax.f32 %v242, %v250
        %v267 = vmax.f32 %v243, %v251
        %v268 = vld [vmem:[%s179 + $0x8] sm:$0xff]
        %v269 = vld [vmem:[%s179 + $0x18] sm:$0xff]
        %v270 = vld [vmem:[%s179 + $0x28] sm:$0xff]
        %v271 = vld [vmem:[%s179 + $0x38] sm:$0xff]
        %v272 = vld [vmem:[%s179 + $0x48] sm:$0xff]
        %v273 = vld [vmem:[%s179 + $0x58] sm:$0xff]
        %v274 = vld [vmem:[%s179 + $0x68] sm:$0xff]
        %v275 = vld [vmem:[%s179 + $0x78] sm:$0xff]
        %v276 = vadd.f32 %v252, %v268
        %v277 = vadd.f32 %v253, %v269
        %v278 = vadd.f32 %v254, %v270
        %v279 = vadd.f32 %v255, %v271
        %v280 = vadd.f32 %v256, %v272
        %v281 = vadd.f32 %v257, %v273
        %v282 = vadd.f32 %v258, %v274
        %v283 = vadd.f32 %v259, %v275
        %v284 = vmax.f32 %v260, %v268
        %v285 = vmax.f32 %v261, %v269
        %v286 = vmax.f32 %v262, %v270
        %v287 = vmax.f32 %v263, %v271
        %v288 = vmax.f32 %v264, %v272
        %v289 = vmax.f32 %v265, %v273
        %v290 = vmax.f32 %v266, %v274
        %v291 = vmax.f32 %v267, %v275
        %292 = vst [vmem:[#allocation2] sm:$0xff] %v276
        %293 = vst [vmem:[#allocation2 + $0x8] sm:$0xff] %v277
        %294 = vst [vmem:[#allocation2 + $0x10] sm:$0xff] %v278
        %295 = vst [vmem:[#allocation2 + $0x18] sm:$0xff] %v279
        %296 = vst [vmem:[#allocation2 + $0x20] sm:$0xff] %v280
        %297 = vst [vmem:[#allocation2 + $0x28] sm:$0xff] %v281
        %298 = vst [vmem:[#allocation2 + $0x30] sm:$0xff] %v282
        %299 = vst [vmem:[#allocation2 + $0x38] sm:$0xff] %v283
        %300 = vst [vmem:[#allocation3] sm:$0xff] %v284
        %301 = vst [vmem:[#allocation3 + $0x8] sm:$0xff] %v285
        %302 = vst [vmem:[#allocation3 + $0x10] sm:$0xff] %v286
        %303 = vst [vmem:[#allocation3 + $0x18] sm:$0xff] %v287
        %304 = vst [vmem:[#allocation3 + $0x20] sm:$0xff] %v288
        %305 = vst [vmem:[#allocation3 + $0x28] sm:$0xff] %v289
        %306 = vst [vmem:[#allocation3 + $0x30] sm:$0xff] %v290
        %307 = vst [vmem:[#allocation3 + $0x38] sm:$0xff] %v291
        // Predicated region
        $region41: #{tpu_custom_call.1} parent=31 // pred_check
          %p308 = pneg %p208
        $region42: #{tpu_custom_call.1} parent=31 // pred_check_branch
          %310 = sbr.rel (%p308) target = $region44
        $region43: #{tpu_custom_call.1} parent=31 // pred_region
          %v311 = vld [vmem:[#allocation2] sm:$0xff]
          %v312 = vld [vmem:[#allocation2 + $0x8] sm:$0xff]
          %v313 = vld [vmem:[#allocation2 + $0x10] sm:$0xff]
          %v314 = vld [vmem:[#allocation2 + $0x18] sm:$0xff]
          %v315 = vld [vmem:[#allocation2 + $0x20] sm:$0xff]
          %v316 = vld [vmem:[#allocation2 + $0x28] sm:$0xff]
          %v317 = vld [vmem:[#allocation2 + $0x30] sm:$0xff]
          %v318 = vld [vmem:[#allocation2 + $0x38] sm:$0xff]
          %319 = vadd.xlane.f32.xlu0 %v311
          %v320 = vpop.xlane.xlu0 %319
          %321 = vadd.xlane.f32.xlu0 %v312
          %v322 = vpop.xlane.xlu0 %321
          %323 = vadd.xlane.f32.xlu0 %v313
          %v324 = vpop.xlane.xlu0 %323
          %325 = vadd.xlane.f32.xlu0 %v314
          %v326 = vpop.xlane.xlu0 %325
          %327 = vadd.xlane.f32.xlu0 %v315
          %v328 = vpop.xlane.xlu0 %327
          %329 = vadd.xlane.f32.xlu0 %v316
          %v330 = vpop.xlane.xlu0 %329
          %331 = vadd.xlane.f32.xlu0 %v317
          %v332 = vpop.xlane.xlu0 %331
          %333 = vadd.xlane.f32.xlu0 %v318
          %v334 = vpop.xlane.xlu0 %333
          %v335 = vmul.f32 %v320, 0.00390625
          %v336 = vmul.f32 %v322, 0.00390625
          %v337 = vmul.f32 %v324, 0.00390625
          %v338 = vmul.f32 %v326, 0.00390625
          %v339 = vmul.f32 %v328, 0.00390625
          %v340 = vmul.f32 %v330, 0.00390625
          %v341 = vmul.f32 %v332, 0.00390625
          %v342 = vmul.f32 %v334, 0.00390625
          %v343 = vld [vmem:[#allocation3] sm:$0xff]
          %v344 = vld [vmem:[#allocation3 + $0x8] sm:$0xff]
          %v345 = vld [vmem:[#allocation3 + $0x10] sm:$0xff]
          %v346 = vld [vmem:[#allocation3 + $0x18] sm:$0xff]
          %v347 = vld [vmem:[#allocation3 + $0x20] sm:$0xff]
          %v348 = vld [vmem:[#allocation3 + $0x28] sm:$0xff]
          %v349 = vld [vmem:[#allocation3 + $0x30] sm:$0xff]
          %v350 = vld [vmem:[#allocation3 + $0x38] sm:$0xff]
          %351 = vmax.xlane.f32.xlu0 %v343
          %v352 = vpop.xlane.xlu0 %351
          %353 = vmax.xlane.f32.xlu0 %v344
          %v354 = vpop.xlane.xlu0 %353
          %355 = vmax.xlane.f32.xlu0 %v345
          %v356 = vpop.xlane.xlu0 %355
          %357 = vmax.xlane.f32.xlu0 %v346
          %v358 = vpop.xlane.xlu0 %357
          %359 = vmax.xlane.f32.xlu0 %v347
          %v360 = vpop.xlane.xlu0 %359
          %361 = vmax.xlane.f32.xlu0 %v348
          %v362 = vpop.xlane.xlu0 %361
          %363 = vmax.xlane.f32.xlu0 %v349
          %v364 = vpop.xlane.xlu0 %363
          %365 = vmax.xlane.f32.xlu0 %v350
          %v366 = vpop.xlane.xlu0 %365
          %v367 = vlaneseq
          %v368 = vand.u32 %v367, 127
          %vm369 = vcmp.eq.s32.totalorder %v368, 0
          %v370 = vsel %vm369, %v335, %v352
          %v371 = vsel %vm369, %v336, %v354
          %v372 = vsel %vm369, %v337, %v356
          %v373 = vsel %vm369, %v338, %v358
          %v374 = vsel %vm369, %v339, %v360
          %v375 = vsel %vm369, %v340, %v362
          %v376 = vsel %vm369, %v341, %v364
          %v377 = vsel %vm369, %v342, %v366
          %v378 = vld [vmem:[%s1] sm:$0xf]
          %vm379 = vcmask 523264
          %v381 = vsel %vm379, %v378, 0
          %383 = vmatprep.subr.mxu0 0.0
          %384 = vmatpush1.msra.mxu0 0.0
          %385 = vmatprep.subr.mxu0 0.0
          %386 = vmatpush1.msra.mxu0 0.0
          %387 = vmatprep.subr.mxu0 0.0
          %388 = vmatpush1.msra.mxu0 0.0
          %389 = vmatprep.subr.mxu0 0.0
          %390 = vmatpush1.msra.mxu0 0.0
          %391 = vmatprep.subr.mxu0 0.0
          %392 = vmatpush1.msra.mxu0 0.0
          %393 = vmatprep.subr.mxu0 0.0
          %394 = vmatpush1.msra.mxu0 0.0
          %395 = vmatprep.subr.mxu0 0.0
          %396 = vmatpush1.msra.mxu0 0.0
          %397 = vmatprep.subr.mxu0 0.0
          %398 = vmatpush1.msra.mxu0 0.0
          %399 = vmatprep.subr.mxu0 0.0
          %400 = vmatpush1.msra.mxu0 %v377
          %401 = vmatprep.subr.mxu0 0.0
          %402 = vmatpush1.msra.mxu0 %v376
          %403 = vmatprep.subr.mxu0 0.0
          %404 = vmatpush1.msra.mxu0 %v375
          %405 = vmatprep.subr.mxu0 0.0
          %406 = vmatpush1.msra.mxu0 %v374
          %407 = vmatprep.subr.mxu0 0.0
          %408 = vmatpush1.msra.mxu0 %v373
          %409 = vmatprep.subr.mxu0 0.0
          %410 = vmatpush1.msra.mxu0 %v372
          %411 = vmatprep.subr.mxu0 0.0
          %412 = vmatpush1.msra.mxu0 %v371
          %413 = vmatprep.subr.mxu0 0.0
          %414 = vmatpush1.msra.mxu0 %v370
          %415 = vmatprep.subr.mxu0 0.0
          %416 = vmatpush2.msra.mxu0 0.0
          %417 = vmatprep.subr.mxu0 0.0
          %418 = vmatpush2.msra.mxu0 0.0
          %419 = vmatprep.subr.mxu0 0.0
          %420 = vmatpush2.msra.mxu0 0.0
          %421 = vmatprep.subr.mxu0 0.0
          %422 = vmatpush2.msra.mxu0 0.0
          %423 = vmatprep.subr.mxu0 0.0
          %424 = vmatpush2.msra.mxu0 0.0
          %425 = vmatprep.subr.mxu0 0.0
          %426 = vmatpush2.msra.mxu0 0.0
          %427 = vmatprep.subr.mxu0 0.0
          %428 = vmatpush2.msra.mxu0 0.0
          %429 = vmatprep.subr.mxu0 0.0
          %430 = vmatpush2.msra.mxu0 0.0
          %431 = vmatprep.subr.mxu0 0.0
          %432 = vmatpush2.msra.mxu0 0.0
          %433 = vmatprep.subr.mxu0 0.0
          %434 = vmatpush2.msra.mxu0 0.0
          %435 = vmatprep.subr.mxu0 0.0
          %436 = vmatpush2.msra.mxu0 0.0
          %437 = vmatprep.subr.mxu0 0.0
          %438 = vmatpush2.msra.mxu0 0.0
          %439 = vmatprep.subr.mxu0 0.0
          %440 = vmatpush2.msra.mxu0 0.0
          %441 = vmatprep.subr.mxu0 0.0
          %442 = vmatpush2.msra.mxu0 0.0
          %443 = vmatprep.subr.mxu0 0.0
          %444 = vmatpush2.msra.mxu0 0.0
          %445 = vmatprep.subr.mxu0 0.0
          %446 = vmatpush2.msra.mxu0 0.0
          %447 = vmatprep.mubr.f32.mxu0 0.0
          %448 = vmatmul.mubr.f32.gmra.mxu0 %v381
          %v449 = vpop.f32.mrf.mxu0
          %v450 = vadd.f32 0.0, %v449
          %v451 = vpop.f32.mrf.mxu0
          %452 = vdwg.mxu0
          %v453 = vmax.f32 %v450, 0.0
          %v454 = vld [vmem:[%s2] sm:$0xff]
          %v455 = vld [vmem:[%s2 + $0x8] sm:$0xff]
          %v456 = vld [vmem:[%s2 + $0x10] sm:$0xff]
          %v457 = vld [vmem:[%s2 + $0x18] sm:$0xff]
          %v458 = vld [vmem:[%s2 + $0x20] sm:$0xff]
          %v459 = vld [vmem:[%s2 + $0x28] sm:$0xff]
          %v460 = vld [vmem:[%s2 + $0x30] sm:$0xff]
          %v461 = vld [vmem:[%s2 + $0x38] sm:$0xff]
          %vm462 = vcmask 31744
          %v464 = vsel %vm462, %v454, 0
          %v467 = vsel %vm462, %v455, 0
          %v470 = vsel %vm462, %v456, 0
          %v473 = vsel %vm462, %v457, 0
          %v476 = vsel %vm462, %v458, 0
          %v479 = vsel %vm462, %v459, 0
          %v482 = vsel %vm462, %v460, 0
          %v485 = vsel %vm462, %v461, 0
          %vm487 = vcmask 1043456
          %v489 = vsel %vm487, %v453, 0
          %491 = vmatprep.subr.mxu0 0.0
          %492 = vmatpush1.msra.mxu0 0.0
          %493 = vmatprep.subr.mxu0 0.0
          %494 = vmatpush1.msra.mxu0 0.0
          %495 = vmatprep.subr.mxu0 0.0
          %496 = vmatpush1.msra.mxu0 0.0
          %497 = vmatprep.subr.mxu0 0.0
          %498 = vmatpush1.msra.mxu0 0.0
          %499 = vmatprep.subr.mxu0 0.0
          %500 = vmatpush1.msra.mxu0 0.0
          %501 = vmatprep.subr.mxu0 0.0
          %502 = vmatpush1.msra.mxu0 0.0
          %503 = vmatprep.subr.mxu0 0.0
          %504 = vmatpush1.msra.mxu0 0.0
          %505 = vmatprep.subr.mxu0 0.0
          %506 = vmatpush1.msra.mxu0 0.0
          %507 = vmatprep.subr.mxu0 0.0
          %508 = vmatpush1.msra.mxu0 0.0
          %509 = vmatprep.subr.mxu0 0.0
          %510 = vmatpush1.msra.mxu0 0.0
          %511 = vmatprep.subr.mxu0 0.0
          %512 = vmatpush1.msra.mxu0 0.0
          %513 = vmatprep.subr.mxu0 0.0
          %514 = vmatpush1.msra.mxu0 0.0
          %515 = vmatprep.subr.mxu0 0.0
          %516 = vmatpush1.msra.mxu0 0.0
          %517 = vmatprep.subr.mxu0 0.0
          %518 = vmatpush1.msra.mxu0 0.0
          %519 = vmatprep.subr.mxu0 0.0
          %520 = vmatpush1.msra.mxu0 0.0
          %521 = vmatprep.subr.mxu0 0.0
          %522 = vmatpush1.msra.mxu0 %v489
          %523 = vmatprep.subr.mxu0 0.0
          %524 = vmatpush2.msra.mxu0 0.0
          %525 = vmatprep.subr.mxu0 0.0
          %526 = vmatpush2.msra.mxu0 0.0
          %527 = vmatprep.subr.mxu0 0.0
          %528 = vmatpush2.msra.mxu0 0.0
          %529 = vmatprep.subr.mxu0 0.0
          %530 = vmatpush2.msra.mxu0 0.0
          %531 = vmatprep.subr.mxu0 0.0
          %532 = vmatpush2.msra.mxu0 0.0
          %533 = vmatprep.subr.mxu0 0.0
          %534 = vmatpush2.msra.mxu0 0.0
          %535 = vmatprep.subr.mxu0 0.0
          %536 = vmatpush2.msra.mxu0 0.0
          %537 = vmatprep.subr.mxu0 0.0
          %538 = vmatpush2.msra.mxu0 0.0
          %539 = vmatprep.subr.mxu0 0.0
          %540 = vmatpush2.msra.mxu0 0.0
          %541 = vmatprep.subr.mxu0 0.0
          %542 = vmatpush2.msra.mxu0 0.0
          %543 = vmatprep.subr.mxu0 0.0
          %544 = vmatpush2.msra.mxu0 0.0
          %545 = vmatprep.subr.mxu0 0.0
          %546 = vmatpush2.msra.mxu0 0.0
          %547 = vmatprep.subr.mxu0 0.0
          %548 = vmatpush2.msra.mxu0 0.0
          %549 = vmatprep.subr.mxu0 0.0
          %550 = vmatpush2.msra.mxu0 0.0
          %551 = vmatprep.subr.mxu0 0.0
          %552 = vmatpush2.msra.mxu0 0.0
          %553 = vmatprep.subr.mxu0 0.0
          %554 = vmatpush2.msra.mxu0 0.0
          %555 = vmatprep.mubr.f32.mxu0 0.0
          %556 = vmatmul.mubr.f32.gmra.mxu0 %v464
          %v557 = vpop.f32.mrf.mxu0
          %v558 = vadd.f32 0.0, %v557
          %v559 = vpop.f32.mrf.mxu0
          %560 = vmatprep.mubr.f32.mxu0 0.0
          %561 = vmatmul.mubr.f32.gmra.mxu0 %v467
          %v562 = vpop.f32.mrf.mxu0
          %v563 = vadd.f32 0.0, %v562
          %v564 = vpop.f32.mrf.mxu0
          %565 = vmatprep.mubr.f32.mxu0 0.0
          %566 = vmatmul.mubr.f32.gmra.mxu0 %v470
          %v567 = vpop.f32.mrf.mxu0
          %v568 = vadd.f32 0.0, %v567
          %v569 = vpop.f32.mrf.mxu0
          %570 = vmatprep.mubr.f32.mxu0 0.0
          %571 = vmatmul.mubr.f32.gmra.mxu0 %v473
          %v572 = vpop.f32.mrf.mxu0
          %v573 = vadd.f32 0.0, %v572
          %v574 = vpop.f32.mrf.mxu0
          %575 = vmatprep.mubr.f32.mxu0 0.0
          %576 = vmatmul.mubr.f32.gmra.mxu0 %v476
          %v577 = vpop.f32.mrf.mxu0
          %v578 = vadd.f32 0.0, %v577
          %v579 = vpop.f32.mrf.mxu0
          %580 = vmatprep.mubr.f32.mxu0 0.0
          %581 = vmatmul.mubr.f32.gmra.mxu0 %v479
          %v582 = vpop.f32.mrf.mxu0
          %v583 = vadd.f32 0.0, %v582
          %v584 = vpop.f32.mrf.mxu0
          %585 = vmatprep.mubr.f32.mxu0 0.0
          %586 = vmatmul.mubr.f32.gmra.mxu0 %v482
          %v587 = vpop.f32.mrf.mxu0
          %v588 = vadd.f32 0.0, %v587
          %v589 = vpop.f32.mrf.mxu0
          %590 = vmatprep.mubr.f32.mxu0 0.0
          %591 = vmatmul.mubr.f32.gmra.mxu0 %v485
          %v592 = vpop.f32.mrf.mxu0
          %v593 = vadd.f32 0.0, %v592
          %v594 = vpop.f32.mrf.mxu0
          %595 = vdwg.mxu0
          %604 = vrot.lane.b32.xlu0 %v558, 127
          %v605 = vpop.permute.xlu0 %604
          %606 = vrot.lane.b32.xlu0 %v563, 127
          %v607 = vpop.permute.xlu0 %606
          %608 = vrot.lane.b32.xlu0 %v568, 127
          %v609 = vpop.permute.xlu0 %608
          %610 = vrot.lane.b32.xlu0 %v573, 127
          %v611 = vpop.permute.xlu0 %610
          %612 = vrot.lane.b32.xlu0 %v578, 127
          %v613 = vpop.permute.xlu0 %612
          %614 = vrot.lane.b32.xlu0 %v583, 127
          %v615 = vpop.permute.xlu0 %614
          %616 = vrot.lane.b32.xlu0 %v588, 127
          %v617 = vpop.permute.xlu0 %616
          %618 = vrot.lane.b32.xlu0 %v593, 127
          %v619 = vpop.permute.xlu0 %618
          %v628 = vadd.f32 %v558, %v605
          %v629 = vadd.f32 %v563, %v607
          %v630 = vadd.f32 %v568, %v609
          %v631 = vadd.f32 %v573, %v611
          %v632 = vadd.f32 %v578, %v613
          %v633 = vadd.f32 %v583, %v615
          %v634 = vadd.f32 %v588, %v617
          %v635 = vadd.f32 %v593, %v619
          %v636 = vxor.u32 %v628, 2147483648
          %v637 = vxor.u32 %v629, 2147483648
          %v638 = vxor.u32 %v630, 2147483648
          %v639 = vxor.u32 %v631, 2147483648
          %v640 = vxor.u32 %v632, 2147483648
          %v641 = vxor.u32 %v633, 2147483648
          %v642 = vxor.u32 %v634, 2147483648
          %v643 = vxor.u32 %v635, 2147483648
          %v644 = vmul.f32 %v636, 1.442695
          %v645 = vpow.pop %v644
          %v646 = vmul.f32 %v637, 1.442695
          %v647 = vpow.pop %v646
          %v648 = vmul.f32 %v638, 1.442695
          %v649 = vpow.pop %v648
          %v650 = vmul.f32 %v639, 1.442695
          %v651 = vpow.pop %v650
          %v652 = vmul.f32 %v640, 1.442695
          %v653 = vpow.pop %v652
          %v654 = vmul.f32 %v641, 1.442695
          %v655 = vpow.pop %v654
          %v656 = vmul.f32 %v642, 1.442695
          %v657 = vpow.pop %v656
          %v658 = vmul.f32 %v643, 1.442695
          %v659 = vpow.pop %v658
          %v660 = vadd.f32 %v645, 1.0
          %v661 = vadd.f32 %v647, 1.0
          %v662 = vadd.f32 %v649, 1.0
          %v663 = vadd.f32 %v651, 1.0
          %v664 = vadd.f32 %v653, 1.0
          %v665 = vadd.f32 %v655, 1.0
          %v666 = vadd.f32 %v657, 1.0
          %v667 = vadd.f32 %v659, 1.0
          %v668 = vrcp.pop %v660
          %v669 = vmul.f32 1.0, %v668
          %v670 = vrcp.pop %v661
          %v671 = vmul.f32 1.0, %v670
          %v672 = vrcp.pop %v662
          %v673 = vmul.f32 1.0, %v672
          %v674 = vrcp.pop %v663
          %v675 = vmul.f32 1.0, %v674
          %v676 = vrcp.pop %v664
          %v677 = vmul.f32 1.0, %v676
          %v678 = vrcp.pop %v665
          %v679 = vmul.f32 1.0, %v678
          %v680 = vrcp.pop %v666
          %v681 = vmul.f32 1.0, %v680
          %v682 = vrcp.pop %v667
          %v683 = vmul.f32 1.0, %v682
          %vm684 = vcmask 7168
          %685 = vst.msk [vmem:[%s207] sm:$0xff] %vm684, %v669
          %686 = vst.msk [vmem:[%s207 + $0x8] sm:$0xff] %vm684, %v671
          %687 = vst.msk [vmem:[%s207 + $0x10] sm:$0xff] %vm684, %v673
          %688 = vst.msk [vmem:[%s207 + $0x18] sm:$0xff] %vm684, %v675
          %689 = vst.msk [vmem:[%s207 + $0x20] sm:$0xff] %vm684, %v677
          %690 = vst.msk [vmem:[%s207 + $0x28] sm:$0xff] %vm684, %v679
          %691 = vst.msk [vmem:[%s207 + $0x30] sm:$0xff] %vm684, %v681
          %692 = vst.msk [vmem:[%s207 + $0x38] sm:$0xff] %vm684, %v683
        $region44: #{tpu_custom_call.1} parent=31 // pred_fallthru
          _
        %p693 = scmp.lt.s32.totalorder %s21, 1
        %s694 = scalar_select %p693, %s21, 1
        %s695 = smul.addr %s694, 8
        %s696 = smul.addr %s695, 8
        %s697 = scalar_lea.vmem %s3, %s696
        // Predicated region
        $region45: #{tpu_custom_call.1} parent=31 // pred_check
          %p698 = pneg %p117
        $region46: #{tpu_custom_call.1} parent=31 // pred_check_branch
          %700 = sbr.rel (%p698) target = $region48
        $region47: #{tpu_custom_call.1} parent=31 // pred_region
          _
        $region48: #{tpu_custom_call.1} parent=31 // pred_fallthru
          _
      $region32: #{tpu_custom_call.1} parent=5 // pred_fallthru
        _
      %p701 = scmp.le.s32.totalorder 2, %s12
      // Predicated region
      $region49: #{tpu_custom_call.1} parent=5 // pred_check
        %p702 = pneg %p701
      $region50: #{tpu_custom_call.1} parent=5 // pred_check_branch
        %704 = sbr.rel (%p702) target = $region52
      $region51: #{tpu_custom_call.1} parent=5 // pred_region
        %s705 = ssub.s32 %s12, 2
        // Predicated region
        $region53: #{tpu_custom_call.1} parent=51 // pred_check
          %p706 = pneg %p123
        $region54: #{tpu_custom_call.1} parent=51 // pred_check_branch
          %708 = sbr.rel (%p706) target = $region56
        $region55: #{tpu_custom_call.1} parent=51 // pred_region
          %p709 = scmp.lt.s32.totalorder %s23, 1
          %s710 = scalar_select %p709, %s23, 1
          %s711 = smul.addr %s710, 8
          %s712 = smul.addr %s711, 8
          %s713 = scalar_lea.vmem %s3, %s712
        $region56: #{tpu_custom_call.1} parent=51 // pred_fallthru
          _
      $region52: #{tpu_custom_call.1} parent=5 // pred_fallthru
        _
    $region6: #{tpu_custom_call.1} parent=1 // loop_footer
      %s16 = sadd.s32 1, %s12
    $region7: #{tpu_custom_call.1} parent=1 // loop_footer_branch
      %11 = sbr.rel target = $region3
    $region8: #{tpu_custom_call.1} parent=1 // loop_exit
      _
    %714 = vsyncpa [#allocation5], 1
    %s715 = scalar_lea.sflag [#allocation5], 1
    %716 = vsyncpa %s715, 1

</llo_original>
